<compile_context>
chip_gen: v7x
topology: tpu7x:2x2x1
jax: 0.10.0
libtpu: 0.0.40
codegen_flags: <defaults>
</compile_context>

<pallas_src>
import jax
import jax.numpy as jnp
from jax.experimental import pallas as pl
from jax.experimental.pallas import tpu as pltpu

ZERO = 1e-10  # module-level epsilon constant from the original file


# --------------------------------------------------------------------------- #
# Small Pallas linear kernel: y = x @ W + b  (full-width K = H gemm).          #
# Used for the hoisted Q/K/V input projections.                                #
# --------------------------------------------------------------------------- #
def _linear_kernel(x_ref, w_ref, b_ref, o_ref):
    o_ref[...] = (jnp.dot(x_ref[...], w_ref[...],
                          preferred_element_type=jnp.float32)
                  + b_ref[...]).astype(o_ref.dtype)


def _linear(x, w, b, *, row_tile=512):
    """x: (R, Din) compute dtype, w: (Din, Dout) compute dtype, b: (Dout,) f32.
    Returns f32 (R, Dout).  Weight/bias blocks are constant-index -> single
    buffered.  (For extremely large Din*Dout the weight would need K/N tiling.)"""
    R, Din = x.shape
    Dout = w.shape[1]
    tm = R if R <= row_tile else row_tile
    n = pl.cdiv(R, tm)
    Rp = n * tm
    if Rp != R:
        x = jnp.pad(x, ((0, Rp - R), (0, 0)))
    out = pl.pallas_call(
        _linear_kernel,
        out_shape=jax.ShapeDtypeStruct((Rp, Dout), jnp.float32),
        grid_spec=pltpu.PrefetchScalarGridSpec(
            num_scalar_prefetch=0,
            grid=(n,),
            in_specs=[
                pl.BlockSpec((tm, Din), lambda i: (i, 0)),
                pl.BlockSpec((Din, Dout), lambda i: (0, 0),
                             pipeline_mode=pl.Buffered(1)),
                pl.BlockSpec((1, Dout), lambda i: (0, 0),
                             pipeline_mode=pl.Buffered(1)),
            ],
            out_specs=pl.BlockSpec((tm, Dout), lambda i: (i, 0))),
        compiler_params=pltpu.CompilerParams(
            dimension_semantics=("parallel",)),
    )(x, w, b.reshape(1, Dout).astype(jnp.float32))
    return out[:R]


# --------------------------------------------------------------------------- #
# Fused attention core + output projection.                                    #
# --------------------------------------------------------------------------- #
def multi_head_attention(Q, K, V, Q_mask, K_mask, params, num_heads, *,
                         q_tile=256, head_chunk=None,
                         compute_dtype=jnp.bfloat16):
    """Q: (B,Sq,H), K,V: (B,Sk,H) f32; masks: (B,S) 0/1 f32.
    params = (Wq,bq,Wk,bk,Wv,bv,Wd,bd) with weights stored (in, out).
    q_tile: 256-512 on v5e/v6e, 128-256 on v7x.  head_chunk bounds the
    (nh_chunk, tq, Sk) f32 softmax intermediates (auto-chosen if None)."""
    B, Sq, H = Q.shape
    Sk = K.shape[1]
    assert H % num_heads == 0
    d = H // num_heads
    cdt = compute_dtype
    approx_recip = (cdt != jnp.float32)   # exact division on the f32 path

    Wq, bq, Wk, bk, Wv, bv, Wd, bd = params

    # ---- input projections: hoisted out of the attention kernel (one full-width
    #      (rows,H)@(H,H) gemm each); sqrt(d) scale folded into Wq / bq ----------
    scale = float(d) ** 0.5    # reference: scores / d**-0.5  ==  * sqrt(d)
    q_proj = _linear(Q.reshape(B * Sq, H).astype(cdt),
                     (Wq * scale).astype(cdt), bq * scale)
    k_proj = _linear(K.reshape(B * Sk, H).astype(cdt), Wk.astype(cdt), bk)
    v_proj = _linear(V.reshape(B * Sk, H).astype(cdt), Wv.astype(cdt), bv)

    def split_heads(x2d, S):   # (B*S, H) -> (B, nh, S, d)   (XLA layout glue)
        return x2d.reshape(B, S, num_heads, d).transpose(0, 2, 1, 3)

    qh = split_heads(q_proj, Sq)
    kh = split_heads(k_proj, Sk).astype(cdt)
    vh = split_heads(v_proj, Sk).astype(cdt)

    # ---- q tiling (+ padding so tq divides the query length) -------------------
    tq = Sq if Sq <= q_tile else q_tile
    assert tq == Sq or tq % 8 == 0
    n_qt = pl.cdiv(Sq, tq)
    Sq_pad = n_qt * tq
    Qm = Q_mask
    if Sq_pad != Sq:
        qh = jnp.pad(qh, ((0, 0), (0, 0), (0, Sq_pad - Sq), (0, 0)))
        Qm = jnp.pad(Q_mask, ((0, 0), (0, Sq_pad - Sq)))   # padded queries masked
    qh = qh.astype(cdt)
    qm = Qm.reshape(B, Sq_pad, 1).astype(jnp.float32)
    km = K_mask.reshape(B, 1, Sk).astype(jnp.float32)

    # ---- head chunking: bound the (nhc, tq, Sk) f32 intermediates (v7x VMEM) ---
    if head_chunk is None:
        budget = 12 << 20                      # ~4 live f32 (nhc,tq,Sk) temporaries
        head_chunk = max(1, budget // (16 * tq * Sk))
    head_chunk = int(max(1, min(num_heads, head_chunk)))
    while num_heads % head_chunk:
        head_chunk -= 1
    nhc = head_chunk
    n_hc = num_heads // nhc

    # ---- head-major output weights ---------------------------------------------
    wd_h = Wd.reshape(num_heads, d, H).astype(cdt)     # (nh, d, H)
    bd2 = bd.reshape(1, H).astype(jnp.float32)

    # ---- VMEM budget: blocks (with buffering) + in-kernel intermediates --------
    itb = jnp.dtype(cdt).itemsize
    blocks = (2 * nhc * tq * d * itb                 # qh (double-buffered)
              + 2 * 2 * nhc * Sk * d * itb           # kh + vh
              + 2 * (tq + Sk) * 4                    # masks
              + (1 if n_hc == 1 else 2) * nhc * d * H * itb   # Wd
              + H * 4                                # bd (single-buffered)
              + 2 * tq * H * 4)                      # output block
    interm = 4 * nhc * tq * Sk * 4 + nhc * tq * d * 4 + 2 * tq * H * 4
    est = blocks + interm
    try:
        phys = int(pltpu.get_tpu_info().vmem_capacity_bytes)
    except Exception:
        phys = 64 << 20   # v7x per-TensorCore VMEM (smallest across generations)
    vmem_limit = int(min(phys - (8 << 20), max(32 << 20, 2 * est)))

    flops = int(4 * B * num_heads * Sq_pad * Sk * d    # scores + context
                + 2 * B * Sq_pad * H * H)              # output projection
    trans = int(B * num_heads * Sq_pad * Sk)
    bytes_acc = int((qh.size + kh.size + vh.size + wd_h.size) * itb
                    + (qm.size + km.size + bd2.size) * 4
                    + B * Sq_pad * H * 4)

    def mha_kernel(qh_ref, kh_ref, vh_ref, qm_ref, km_ref, wd_ref, bd_ref, o_ref):
        hc = pl.program_id(2)

        qh_t = qh_ref[0]            # (nhc, tq, d)  compute dtype
        kh_t = kh_ref[0]            # (nhc, Sk, d)
        vh_t = vh_ref[0]            # (nhc, Sk, d)

        # scores: batched trans-B contraction, f32 accumulation
        s = jnp.einsum('hqd,hkd->hqk', qh_t, kh_t,
                       preferred_element_type=jnp.float32)        # (nhc, tq, Sk)

        # fused softmax + post-softmax 0/1 mask + ZERO renormalization (exact):
        #   reference: p = softmax(s); p = where(mask==0, 0, p); p /= sum(p+ZERO)
        #   fused:     p = e_m / (sum(e_m) + Sk*ZERO*sum(e))
        m = jnp.max(s, axis=-1, keepdims=True)
        e = jnp.exp(s - m)
        sum_e = jnp.sum(e, axis=-1, keepdims=True)
        mask = qm_ref[0] * km_ref[0]                              # (tq, Sk)
        e_m = jnp.where((mask == 0.0)[None], 0.0, e)              # (nhc, tq, Sk)
        denom = jnp.sum(e_m, axis=-1, keepdims=True) + (float(Sk) * ZERO) * sum_e
        if approx_recip:
            probs = e_m * pl.reciprocal(denom, approx=True)       # EUP path (bf16)
        else:
            probs = e_m / denom                                   # exact (f32 path)

        # context: (nhc,tq,Sk) x (nhc,Sk,d) -> (nhc,tq,d)
        ctx = jnp.einsum('hqk,hkd->hqd', probs.astype(cdt), vh_t,
                         preferred_element_type=jnp.float32).astype(cdt)

        # fused output projection + head recombination: accumulate per-head
        # (tq,d)@(d,H) products into one f32 (tq,H) value (no (nh,tq,H) temp).
        part = jnp.dot(ctx[0], wd_ref[0], preferred_element_type=jnp.float32)
        for h in range(1, nhc):
            part = part + jnp.dot(ctx[h], wd_ref[h],
                                  preferred_element_type=jnp.float32)

        # accumulate across head chunks in the (resident) f32 output block
        @pl.when(hc == 0)
        def _():
            o_ref[0] = part + bd_ref[...]

        @pl.when(hc != 0)
        def _():
            o_ref[0] = o_ref[0] + part

    out = pl.pallas_call(
        mha_kernel,
        out_shape=jax.ShapeDtypeStruct((B, Sq_pad, H), jnp.float32),
        grid_spec=pltpu.PrefetchScalarGridSpec(
            num_scalar_prefetch=0,
            grid=(B, n_qt, n_hc),
            in_specs=[
                pl.BlockSpec((1, nhc, tq, d), lambda b, qi, hc: (b, hc, qi, 0)),
                pl.BlockSpec((1, nhc, Sk, d), lambda b, qi, hc: (b, hc, 0, 0)),
                pl.BlockSpec((1, nhc, Sk, d), lambda b, qi, hc: (b, hc, 0, 0)),
                pl.BlockSpec((1, tq, 1),      lambda b, qi, hc: (b, qi, 0)),
                pl.BlockSpec((1, 1, Sk),      lambda b, qi, hc: (b, 0, 0)),
                pl.BlockSpec((nhc, d, H),     lambda b, qi, hc: (hc, 0, 0),
                             pipeline_mode=(pl.Buffered(1) if n_hc == 1 else None)),
                pl.BlockSpec((1, H),          lambda b, qi, hc: (0, 0),
                             pipeline_mode=pl.Buffered(1)),
            ],
            out_specs=pl.BlockSpec((1, tq, H), lambda b, qi, hc: (b, qi, 0))),
        compiler_params=pltpu.CompilerParams(
            # batch and q tiles are independent (q is parallel now that there is no
            # per-batch projection scratch); head-chunk axis accumulates -> last,
            # arbitrary (reduction axis last).
            dimension_semantics=("parallel", "parallel", "arbitrary"),
            vmem_limit_bytes=vmem_limit),
        cost_estimate=pl.CostEstimate(flops=flops, transcendentals=trans,
                                      bytes_accessed=bytes_acc),
    )(qh, kh, vh, qm, km, wd_h, bd2)

    return out[:, :Sq, :]


# --------------------------------------------------------------------------- #
# Pure-JAX reference matching the PyTorch forward (eval mode).                 #
# --------------------------------------------------------------------------- #
def _reference(Q, K, V, Q_mask, K_mask, params, num_heads):
    B, Sq, H = Q.shape
    Sk = K.shape[1]
    d = H // num_heads
    Wq, bq, Wk, bk, Wv, bv, Wd, bd = params

    def split(x, S):
        return x.reshape(B, S, num_heads, d).transpose(0, 2, 1, 3)

    qh = split(Q @ Wq + bq, Sq)
    kh = split(K @ Wk + bk, Sk)
    vh = split(V @ Wv + bv, Sk)

    scores = jnp.einsum('bhqd,bhkd->bhqk', qh, kh) / (d ** (-0.5))
    mask = jnp.einsum('bq,bk->bqk', Q_mask, K_mask)
    probs = jax.nn.softmax(scores, axis=-1)
    probs = jnp.where(mask[:, None] == 0, 0.0, probs)
    probs = probs / jnp.sum(probs + ZERO, axis=-1, keepdims=True)
    ctx = jnp.einsum('bhqk,bhkd->bhqd', probs, vh)
    ctx = ctx.transpose(0, 2, 1, 3).reshape(B, Sq, H)
    return ctx @ Wd + bd


if __name__ == "__main__":
    B, S, H, NH = 2, 16, 32, 4

    key = jax.random.PRNGKey(0)
    ks = jax.random.split(key, 11)
    sc = 0.1
    # Linear params in (in, out) layout (transposed vs. torch's nn.Linear.weight)
    Wq = jax.random.normal(ks[0], (H, H), jnp.float32) * sc
    bq = jax.random.normal(ks[1], (H,), jnp.float32) * sc
    Wk = jax.random.normal(ks[2], (H, H), jnp.float32) * sc
    bk = jax.random.normal(ks[3], (H,), jnp.float32) * sc
    Wv = jax.random.normal(ks[4], (H, H), jnp.float32) * sc
    bv = jax.random.normal(ks[5], (H,), jnp.float32) * sc
    Wd = jax.random.normal(ks[6], (H, H), jnp.float32) * sc
    bd = jax.random.normal(ks[7], (H,), jnp.float32) * sc
    params = (Wq, bq, Wk, bk, Wv, bv, Wd, bd)

    Q = jax.random.normal(ks[8], (B, S, H), jnp.float32)
    K = jax.random.normal(ks[9], (B, S, H), jnp.float32)
    V = jax.random.normal(ks[10], (B, S, H), jnp.float32)

    # 0/1 padding masks with different valid lengths per batch
    pos = jnp.arange(S)
    Q_mask = jnp.stack([(pos < 12), (pos < 16)]).astype(jnp.float32)   # (B, S)
    K_mask = jnp.stack([(pos < 10), (pos < 14)]).astype(jnp.float32)   # (B, S)

    ref = _reference(Q, K, V, Q_mask, K_mask, params, NH)

    # f32 operand path (semantics check), exercising q tiling + head chunking
    # (grid (B, 2, 2)) and the exact-division softmax path.
    out_f32 = multi_head_attention(Q, K, V, Q_mask, K_mask, params, NH,
                                   q_tile=8, head_chunk=2,
                                   compute_dtype=jnp.float32)
    out_f32 = jax.block_until_ready(out_f32)
    assert out_f32.shape == (B, S, H)
    err_f32 = float(jnp.max(jnp.abs(out_f32 - ref)))
    assert err_f32 < 3e-2, err_f32

    # default mixed-precision path (bf16 MXU operands, f32 accumulation,
    # single head chunk, approx EUP reciprocal)
    out_bf16 = multi_head_attention(Q, K, V, Q_mask, K_mask, params, NH)
    out_bf16 = jax.block_until_ready(out_bf16)
    assert out_bf16.shape == (B, S, H)
    err_bf16 = float(jnp.max(jnp.abs(out_bf16 - ref)))
    assert err_bf16 < 1.5e-1, err_bf16

    print("KERNEL_OK")
</pallas_src>

<mosaic_0001>
module attributes {stable_mosaic.version = 11 : i64} {
  func.func @_linear_kernel(%arg0: i32, %arg1: memref<32x32xf32, #tpu.memory_space<vmem>>, %arg2: memref<32x32xf32, #tpu.memory_space<vmem>>, %arg3: memref<1x32xf32, #tpu.memory_space<vmem>>, %arg4: memref<32x32xf32, #tpu.memory_space<vmem>>) attributes {dimension_semantics = [#tpu.dimension_semantics<parallel>], iteration_bounds = array<i64: 1>, scalar_prefetch = 0 : i64, scratch_operands = 0 : i64, tpu.core_type = #tpu.core_type<tc>, window_params = [{transform_indices = @transform_0, window_bounds = array<i64: 32, 32>}, {pipeline_mode = #tpu.pipeline_mode<synchronous>, transform_indices = @transform_1, window_bounds = array<i64: 32, 32>}, {pipeline_mode = #tpu.pipeline_mode<synchronous>, transform_indices = @transform_2, window_bounds = array<i64: 1, 32>}, {transform_indices = @transform_3, window_bounds = array<i64: 32, 32>}]} {
    %c0 = arith.constant 0 : index
    %c0_0 = arith.constant 0 : index
    %0 = vector.load %arg1[%c0, %c0_0] : memref<32x32xf32, #tpu.memory_space<vmem>>, vector<32x32xf32>
    %c0_1 = arith.constant 0 : index
    %c0_2 = arith.constant 0 : index
    %1 = vector.load %arg2[%c0_1, %c0_2] : memref<32x32xf32, #tpu.memory_space<vmem>>, vector<32x32xf32>
    %cst = arith.constant dense<0.000000e+00> : vector<32x32xf32>
    %2 = tpu.matmul %0, %1, %cst {dimension_numbers = #tpu.dot_dimension_numbers<[1], [0], [0], [1], [0, 0, 1, 1], [], []>} : vector<32x32xf32>, vector<32x32xf32>, vector<32x32xf32> -> vector<32x32xf32>
    %c0_3 = arith.constant 0 : index
    %c0_4 = arith.constant 0 : index
    %3 = vector.load %arg3[%c0_3, %c0_4] : memref<1x32xf32, #tpu.memory_space<vmem>>, vector<1x32xf32>
    %4 = vector.broadcast %3 : vector<1x32xf32> to vector<32x32xf32>
    %5 = arith.addf %2, %4 : vector<32x32xf32>
    %c0_5 = arith.constant 0 : index
    %c0_6 = arith.constant 0 : index
    %6 = vector.load %arg4[%c0_5, %c0_6] : memref<32x32xf32, #tpu.memory_space<vmem>>, vector<32x32xf32>
    tpu.vector_store %arg4[%c0_5, %c0_6], %5 {strides = array<i32>} : memref<32x32xf32, #tpu.memory_space<vmem>>, vector<32x32xf32>,
    return
  }
  func.func @transform_0(%arg0: i32) -> (i32, i32) {
    %c0_i32 = arith.constant 0 : i32
    %c0_i32_0 = arith.constant 0 : i32
    return %arg0, %c0_i32 : i32, i32
  }
  func.func @transform_1(%arg0: i32) -> (i32, i32) {
    %c0_i32 = arith.constant 0 : i32
    %c0_i32_0 = arith.constant 0 : i32
    %c0_i32_1 = arith.constant 0 : i32
    return %c0_i32, %c0_i32_0 : i32, i32
  }
  func.func @transform_2(%arg0: i32) -> (i32, i32) {
    %c0_i32 = arith.constant 0 : i32
    %c0_i32_0 = arith.constant 0 : i32
    %c0_i32_1 = arith.constant 0 : i32
    return %c0_i32, %c0_i32_0 : i32, i32
  }
  func.func @transform_3(%arg0: i32) -> (i32, i32) {
    %c0_i32 = arith.constant 0 : i32
    %c0_i32_0 = arith.constant 0 : i32
    return %arg0, %c0_i32 : i32, i32
  }
}

</mosaic_0001>

<llo_original>
// kernel: tpu_custom_call.1
$region0: #{tpu_custom_call.1}
  #allocation0 [shape = 'u32[]', space=smem, size = 0x4, offset = 0x4, fixed_abs, tag = 'smem constant byte address 0x4 - core index']
  #allocation1 [shape = 'u32[144,128]{1,0:T(1,128)}', space=vmem, size = 0x12000, scoped, tag = 'internal scratch']
  %s0 = inlined_call_operand.hbm [shape: f32[32,32], index: 0, kind: input, shape index: {}]
  %s1 = inlined_call_operand.hbm [shape: f32[32,32], index: 1, kind: input, shape index: {}]
  %s2 = inlined_call_operand.vmem [shape: f32[1,32], index: 2, kind: input, shape index: {}]
  %s3 = inlined_call_operand.hbm [shape: f32[32,32], index: 3, kind: output, shape index: {}]
  %s4 = sld [smem:[#allocation0]]
  $region30: #{tpu_custom_call.1} parent=0
    _
  %s6 = ssub.s32 1, %s4
  %s7 = scalar_select 0, %s6, %s4
  $region1: #{tpu_custom_call.1} parent=0
    #allocation2 [shape = 'u8[16384]{0}', space=vmem, size = 0x4000, scoped, tag = 'input window, operand 0, single buffered']
    #allocation3 [shape = 's32[1]{0}', space=sflag, size = 0x4, scoped, tag = 'scoped memory for tpu_custom_call.1']
    #allocation4 [shape = 's32[1]{0}', space=sflag, size = 0x4, scoped, tag = 'scoped memory for tpu_custom_call.1']
    #allocation5 [shape = 'u8[16384]{0}', space=vmem, size = 0x4000, scoped, tag = 'input window, operand 1, single buffered']
    #allocation6 [shape = 's32[1]{0}', space=sflag, size = 0x4, scoped, tag = 'scoped memory for tpu_custom_call.1']
    #allocation7 [shape = 'u8[16384]{0}', space=vmem, size = 0x4000, scoped, tag = 'output window, operand 0, single buffered']
    %8 = vsyncpa [#allocation3], 0
    %9 = vsyncpa [#allocation6], 0
    %10 = vsyncpa [#allocation4], 0
    // Predicated region
    $region2: #{tpu_custom_call.1} parent=1 // pred_check
      _
    $region3: #{tpu_custom_call.1} parent=1 // pred_check_branch
      %12 = sbr.rel (0) target = $region5
    $region4: #{tpu_custom_call.1} parent=1 // pred_region
      %s14 = ssub.s32 512, 512
      %15 = vsyncadd [#allocation3], %s14
      %s16 = sshll.u32 [#allocation2], 4
      %s17 = int_to_ptr.vmem [resolvable:$true] %s16
      %22 = dma.hbm_to_vmem [thread:$0]  %s0, 512, %s17, [#allocation3], 128, 128, 8
    $region5: #{tpu_custom_call.1} parent=1 // pred_fallthru
      _
    // Predicated region
    $region6: #{tpu_custom_call.1} parent=1 // pred_check
      _
    $region7: #{tpu_custom_call.1} parent=1 // pred_check_branch
      %24 = sbr.rel (0) target = $region9
    $region8: #{tpu_custom_call.1} parent=1 // pred_region
      %s26 = ssub.s32 512, 512
      %27 = vsyncadd [#allocation6], %s26
      %s28 = sshll.u32 [#allocation5], 4
      %s29 = int_to_ptr.vmem [resolvable:$true] %s28
      %34 = dma.hbm_to_vmem [thread:$0]  %s1, 512, %s29, [#allocation6], 128, 128, 8
    $region9: #{tpu_custom_call.1} parent=1 // pred_fallthru
      _
    // Predicated region
    $region10: #{tpu_custom_call.1} parent=1 // pred_check
      _
    $region11: #{tpu_custom_call.1} parent=1 // pred_check_branch
      %36 = sbr.rel (0) target = $region13
    $region12: #{tpu_custom_call.1} parent=1 // pred_region
      _
    $region13: #{tpu_custom_call.1} parent=1 // pred_fallthru
      _
    // Predicated region
    $region14: #{tpu_custom_call.1} parent=1 // pred_check
      _
    $region15: #{tpu_custom_call.1} parent=1 // pred_check_branch
      %38 = sbr.rel (0) target = $region17
    $region16: #{tpu_custom_call.1} parent=1 // pred_region
      %39 = dma.done [#allocation3], 512
    $region17: #{tpu_custom_call.1} parent=1 // pred_fallthru
      _
    // Predicated region
    $region18: #{tpu_custom_call.1} parent=1 // pred_check
      _
    $region19: #{tpu_custom_call.1} parent=1 // pred_check_branch
      %41 = sbr.rel (0) target = $region21
    $region20: #{tpu_custom_call.1} parent=1 // pred_region
      %42 = dma.done [#allocation6], 512
    $region21: #{tpu_custom_call.1} parent=1 // pred_fallthru
      _
    %v43 = vld [vmem:[#allocation2] sm:$0xff]
    %v44 = vld [vmem:[#allocation2 + $0x8] sm:$0xff]
    %v45 = vld [vmem:[#allocation2 + $0x10] sm:$0xff]
    %v46 = vld [vmem:[#allocation2 + $0x18] sm:$0xff]
    %v47 = vld [vmem:[#allocation5] sm:$0xff]
    %v48 = vld [vmem:[#allocation5 + $0x8] sm:$0xff]
    %v49 = vld [vmem:[#allocation5 + $0x10] sm:$0xff]
    %v50 = vld [vmem:[#allocation5 + $0x18] sm:$0xff]
    %v51 = vld [vmem:[%s2] sm:$0x1]
    %v53 = vlaneseq
    %v54 = vshrl.u32 %v53, 7
    %v55 = vsub.s32 0, %v54
    %v56 = vrot.slane %v51, %v55
    %vm58 = vcmask 261120
    %v60 = vsel %vm58, %v43, 0
    %v63 = vsel %vm58, %v44, 0
    %v66 = vsel %vm58, %v45, 0
    %v69 = vsel %vm58, %v46, 0
    %71 = vmatprep.subr.mxu0 0.0
    %72 = vmatpush1.msra.mxu0 %v47
    %73 = vmatprep.subr.mxu0 0.0
    %74 = vmatpush1.msra.mxu0 %v48
    %75 = vmatprep.subr.mxu0 0.0
    %76 = vmatpush1.msra.mxu0 %v49
    %77 = vmatprep.subr.mxu0 0.0
    %78 = vmatpush1.msra.mxu0 %v50
    %79 = vmatprep.subr.mxu0 0.0
    %80 = vmatpush1.msra.mxu0 0.0
    %81 = vmatprep.subr.mxu0 0.0
    %82 = vmatpush1.msra.mxu0 0.0
    %83 = vmatprep.subr.mxu0 0.0
    %84 = vmatpush1.msra.mxu0 0.0
    %85 = vmatprep.subr.mxu0 0.0
    %86 = vmatpush1.msra.mxu0 0.0
    %87 = vmatprep.subr.mxu0 0.0
    %88 = vmatpush1.msra.mxu0 0.0
    %89 = vmatprep.subr.mxu0 0.0
    %90 = vmatpush1.msra.mxu0 0.0
    %91 = vmatprep.subr.mxu0 0.0
    %92 = vmatpush1.msra.mxu0 0.0
    %93 = vmatprep.subr.mxu0 0.0
    %94 = vmatpush1.msra.mxu0 0.0
    %95 = vmatprep.subr.mxu0 0.0
    %96 = vmatpush1.msra.mxu0 0.0
    %97 = vmatprep.subr.mxu0 0.0
    %98 = vmatpush1.msra.mxu0 0.0
    %99 = vmatprep.subr.mxu0 0.0
    %100 = vmatpush1.msra.mxu0 0.0
    %101 = vmatprep.subr.mxu0 0.0
    %102 = vmatpush1.msra.mxu0 0.0
    %103 = vmatprep.subr.mxu0 0.0
    %104 = vmatpush1.msra.mxu0 0.0
    %105 = vmatprep.subr.mxu0 0.0
    %106 = vmatpush1.msra.mxu0 0.0
    %107 = vmatprep.subr.mxu0 0.0
    %108 = vmatpush1.msra.mxu0 0.0
    %109 = vmatprep.subr.mxu0 0.0
    %110 = vmatpush1.msra.mxu0 0.0
    %111 = vmatprep.subr.mxu0 0.0
    %112 = vmatpush1.msra.mxu0 0.0
    %113 = vmatprep.subr.mxu0 0.0
    %114 = vmatpush1.msra.mxu0 0.0
    %115 = vmatprep.subr.mxu0 0.0
    %116 = vmatpush1.msra.mxu0 0.0
    %117 = vmatprep.subr.mxu0 0.0
    %118 = vmatpush1.msra.mxu0 0.0
    %119 = vmatprep.subr.mxu0 0.0
    %120 = vmatpush1.msra.mxu0 0.0
    %121 = vmatprep.subr.mxu0 0.0
    %122 = vmatpush1.msra.mxu0 0.0
    %123 = vmatprep.subr.mxu0 0.0
    %124 = vmatpush1.msra.mxu0 0.0
    %125 = vmatprep.subr.mxu0 0.0
    %126 = vmatpush1.msra.mxu0 0.0
    %127 = vmatprep.subr.mxu0 0.0
    %128 = vmatpush1.msra.mxu0 0.0
    %129 = vmatprep.subr.mxu0 0.0
    %130 = vmatpush1.msra.mxu0 0.0
    %131 = vmatprep.subr.mxu0 0.0
    %132 = vmatpush1.msra.mxu0 0.0
    %133 = vmatprep.subr.mxu0 0.0
    %134 = vmatpush1.msra.mxu0 0.0
    %135 = vmatprep.mubr.f32.mxu0 0.0
    %136 = vmatmul.mubr.f32.gmra.mrb[0].mxu0 %v60
    %v137 = vpop.f32.mrb[0].mxu0
    %v138 = vadd.f32 %v56, %v137
    %v139 = vpop.f32.mrb[0].mxu0
    %140 = vmatprep.mubr.f32.mxu0 0.0
    %141 = vmatmul.mubr.f32.gmra.mrb[0].mxu0 %v63
    %v142 = vpop.f32.mrb[0].mxu0
    %v143 = vadd.f32 %v56, %v142
    %v144 = vpop.f32.mrb[0].mxu0
    %145 = vmatprep.mubr.f32.mxu0 0.0
    %146 = vmatmul.mubr.f32.gmra.mrb[0].mxu0 %v66
    %v147 = vpop.f32.mrb[0].mxu0
    %v148 = vadd.f32 %v56, %v147
    %v149 = vpop.f32.mrb[0].mxu0
    %150 = vmatprep.mubr.f32.mxu0 0.0
    %151 = vmatmul.mubr.f32.gmra.mrb[0].mxu0 %v69
    %v152 = vpop.f32.mrb[0].mxu0
    %v153 = vadd.f32 %v56, %v152
    %v154 = vpop.f32.mrb[0].mxu0
    %155 = vdwg.mxu0
    %156 = vst.msk [vmem:[#allocation7] sm:$0xff] %vm58, %v138
    %157 = vst.msk [vmem:[#allocation7 + $0x8] sm:$0xff] %vm58, %v143
    %158 = vst.msk [vmem:[#allocation7 + $0x10] sm:$0xff] %vm58, %v148
    %159 = vst.msk [vmem:[#allocation7 + $0x18] sm:$0xff] %vm58, %v153
    // Predicated region
    $region22: #{tpu_custom_call.1} parent=1 // pred_check
      _
    $region23: #{tpu_custom_call.1} parent=1 // pred_check_branch
      %161 = sbr.rel (0) target = $region25
    $region24: #{tpu_custom_call.1} parent=1 // pred_region
      %s163 = ssub.s32 512, 512
      %164 = vsyncadd [#allocation4], %s163
      %s165 = sshll.u32 [#allocation7], 4
      %s166 = int_to_ptr.vmem [resolvable:$true] %s165
      %171 = dma.vmem_to_hbm [thread:$0]  %s166, 512, %s3, [#allocation4], 128, 128, 8
    $region25: #{tpu_custom_call.1} parent=1 // pred_fallthru
      _
    // Predicated region
    $region26: #{tpu_custom_call.1} parent=1 // pred_check
      _
    $region27: #{tpu_custom_call.1} parent=1 // pred_check_branch
      %173 = sbr.rel (0) target = $region29
    $region28: #{tpu_custom_call.1} parent=1 // pred_region
      %174 = dma.done [#allocation4], 512
    $region29: #{tpu_custom_call.1} parent=1 // pred_fallthru
      _
    %175 = vsyncpa [#allocation3], 1
    %176 = vsyncpa [#allocation6], 1
    %177 = vsyncpa [#allocation4], 1

</llo_original>
